<compile_context>
chip_gen: v5e
topology: v5e:2x2
jax: 0.10.0
libtpu: 0.0.40
codegen_flags: <defaults>
</compile_context>

<pallas_src>
import jax
import jax.numpy as jnp
from jax.experimental import pallas as pl
from jax.experimental.pallas import tpu as pltpu


def _mlp_scoring_kernel(exp_ref, tgt_ref, w1e_ref, w1t_ref, b1_ref, w2_ref,
                        b2_ref, out_ref):
    bt, et, d_e = exp_ref.shape
    h_dim = w1e_ref.shape[1]

    # First linear layer with the concat eliminated:
    #   x @ W1 == expansion @ W1_e + target @ W1_t
    exp2d = exp_ref[...].reshape(bt * et, d_e)
    h = jnp.dot(exp2d, w1e_ref[...], preferred_element_type=jnp.float32)
    h = h.reshape(bt, et, h_dim)
    # Target contribution computed once per batch row, broadcast across E
    # in-register (no (B*E, D_t) HBM materialization).
    ht = jnp.dot(tgt_ref[...], w1t_ref[...], preferred_element_type=jnp.float32)
    h = h + ht[:, None, :] + b1_ref[...]
    h = jnp.maximum(h, 0.0)                         # ReLU (dropouts = identity)

    # Second linear layer (H -> 1) as VPU multiply + lane reduction; the MXU
    # N=1 matmul is avoided and the result is lane-dense (E on the lane axis).
    y = jnp.sum(h * w2_ref[...], axis=-1) + b2_ref[0, 0]      # (bt, et)
    out_ref[...] = y.astype(out_ref.dtype)


def _round_up(x, m):
    return ((x + m - 1) // m) * m


def mlp_scoring(target, expansion_embeddings, w1, b1, w2, b2,
                *, max_rows_per_tile=2048):
    """target: (B, D_t) f32, expansion_embeddings: (B, E, D_e) f32 -> (B, E, 1).

    w1: (D_e + D_t, H), b1: (1, H), w2: (H, 1), b2: (1, 1)
    (weights stored transposed relative to PyTorch nn.Linear's (out, in)).
    """
    B, E, D_e = expansion_embeddings.shape
    D_t = target.shape[-1]
    H = w1.shape[1]

    # Split W1 so the kernel never concatenates on the lane axis.
    w1_e = w1[:D_e]                          # (D_e, H)
    w1_t = w1[D_e:]                          # (D_t, H)
    w2_row = w2.reshape(1, H)                # row layout for the VPU reduce
    b2_s = jnp.asarray(b2, jnp.float32).reshape(1, 1)

    # ---- Tile sizing --------------------------------------------------------
    # Expansion axis: only tiled when very large (keeps output lane-dense).
    if E <= max_rows_per_tile:
        e_tile, E_pad = E, E
    else:
        e_tile = 1024                        # multiple of (8, 128)
        E_pad = _round_up(E, e_tile)

    # Batch axis: large tiles (multiple of 8) so each grid step moves ~MBs.
    b_tile = max(1, max_rows_per_tile // e_tile)
    b_tile = _round_up(min(b_tile, B), 8)

    # Keep double-buffered inputs + activations well inside scoped VMEM
    # (budget against v7x's smaller VMEM rather than v6e's 128 MiB).
    def _tile_bytes(bt):
        inputs = 2 * 4 * bt * (e_tile * D_e + D_t)   # double-buffered inputs
        acts = 4 * bt * e_tile * (H + 1)             # hidden + output tile
        return inputs + acts

    while b_tile > 8 and _tile_bytes(b_tile) > 24 * 1024 * 1024:
        b_tile = _round_up(b_tile // 2, 8)

    B_pad = _round_up(B, b_tile)

    # Remainder handling: pad batch/expansion axes, slice the result back.
    if (B_pad, E_pad) != (B, E):
        expansion_embeddings = jnp.pad(
            expansion_embeddings, ((0, B_pad - B), (0, E_pad - E), (0, 0)))
        target = jnp.pad(target, ((0, B_pad - B), (0, 0)))

    grid = (B_pad // b_tile, E_pad // e_tile)

    out = pl.pallas_call(
        _mlp_scoring_kernel,
        out_shape=jax.ShapeDtypeStruct((B_pad, E_pad), jnp.float32),
        grid_spec=pltpu.PrefetchScalarGridSpec(
            num_scalar_prefetch=0,
            grid=grid,
            in_specs=[
                pl.BlockSpec((b_tile, e_tile, D_e), lambda b, e: (b, e, 0)),
                pl.BlockSpec((b_tile, D_t), lambda b, e: (b, 0)),
                pl.BlockSpec((D_e, H), lambda b, e: (0, 0)),
                pl.BlockSpec((D_t, H), lambda b, e: (0, 0)),
                pl.BlockSpec((1, H), lambda b, e: (0, 0)),
                pl.BlockSpec((1, H), lambda b, e: (0, 0)),
                pl.BlockSpec(memory_space=pltpu.MemorySpace.SMEM),   # b2 scalar
            ],
            out_specs=pl.BlockSpec((b_tile, e_tile), lambda b, e: (b, e)),
        ),
        compiler_params=pltpu.CompilerParams(
            dimension_semantics=("parallel", "parallel"),
            vmem_limit_bytes=48 * 1024 * 1024,
        ),
    )(expansion_embeddings, target, w1_e, w1_t, b1, w2_row, b2_s)

    return out[:B, :E].reshape(B, E, 1)


if __name__ == "__main__":
    # Small shapes consistent with the module's forward.
    B, E = 2, 8
    D_e, D_t = 16, 16
    input_size = D_e + D_t           # 32
    hidden_size = 32                 # module default is 128; small for the test

    key = jax.random.PRNGKey(0)
    k_t, k_e, k_w1, k_b1, k_w2, k_b2 = jax.random.split(key, 6)

    target = jax.random.normal(k_t, (B, D_t), dtype=jnp.float32)
    expansion = jax.random.normal(k_e, (B, E, D_e), dtype=jnp.float32)

    # Deterministic parameter init (synthetic, not a checkpoint load).
    w1 = 0.05 * jax.random.normal(k_w1, (input_size, hidden_size), dtype=jnp.float32)
    b1 = 0.05 * jax.random.normal(k_b1, (1, hidden_size), dtype=jnp.float32)
    w2 = 0.05 * jax.random.normal(k_w2, (hidden_size, 1), dtype=jnp.float32)
    b2 = 0.05 * jax.random.normal(k_b2, (1, 1), dtype=jnp.float32)

    y = mlp_scoring(target, expansion, w1, b1, w2, b2)
    jax.block_until_ready(y)

    # Pure-JAX reference (dropout = identity at eval).
    x_ref = jnp.concatenate(
        [expansion, jnp.broadcast_to(target[:, None, :], (B, E, D_t))], axis=-1)
    h_ref = jnp.maximum(x_ref @ w1 + b1[0], 0.0)
    y_ref = h_ref @ w2 + b2[0]       # (B, E, 1)

    assert y.shape == (B, E, 1)
    assert jnp.allclose(y, y_ref, atol=1e-5, rtol=1e-5)
    print("KERNEL_OK")
</pallas_src>

<mosaic_0001>
module attributes {stable_mosaic.version = 11 : i64} {
  func.func @_mlp_scoring_kernel(%arg0: i32, %arg1: i32, %arg2: memref<8x8x16xf32, #tpu.memory_space<vmem>>, %arg3: memref<8x16xf32, #tpu.memory_space<vmem>>, %arg4: memref<16x32xf32, #tpu.memory_space<vmem>>, %arg5: memref<16x32xf32, #tpu.memory_space<vmem>>, %arg6: memref<1x32xf32, #tpu.memory_space<vmem>>, %arg7: memref<1x32xf32, #tpu.memory_space<vmem>>, %arg8: memref<1x1xf32, #tpu.memory_space<smem>>, %arg9: memref<8x8xf32, #tpu.memory_space<vmem>>) attributes {dimension_semantics = [#tpu.dimension_semantics<parallel>, #tpu.dimension_semantics<parallel>], iteration_bounds = array<i64: 1, 1>, scalar_prefetch = 0 : i64, scratch_operands = 0 : i64, tpu.core_type = #tpu.core_type<tc>, window_params = [{transform_indices = @transform_0, window_bounds = array<i64: 8, 8, 16>}, {transform_indices = @transform_1, window_bounds = array<i64: 8, 16>}, {pipeline_mode = #tpu.pipeline_mode<synchronous>, transform_indices = @transform_2, window_bounds = array<i64: 16, 32>}, {pipeline_mode = #tpu.pipeline_mode<synchronous>, transform_indices = @transform_3, window_bounds = array<i64: 16, 32>}, {pipeline_mode = #tpu.pipeline_mode<synchronous>, transform_indices = @transform_4, window_bounds = array<i64: 1, 32>}, {pipeline_mode = #tpu.pipeline_mode<synchronous>, transform_indices = @transform_5, window_bounds = array<i64: 1, 32>}, {transform_indices = @transform_6, window_bounds = array<i64: 1, 1>}, {transform_indices = @transform_7, window_bounds = array<i64: 8, 8>}]} {
    %c0 = arith.constant 0 : index
    %c0_0 = arith.constant 0 : index
    %c0_1 = arith.constant 0 : index
    %0 = vector.load %arg2[%c0, %c0_0, %c0_1] : memref<8x8x16xf32, #tpu.memory_space<vmem>>, vector<8x8x16xf32>
    %1 = vector.shape_cast %0 : vector<8x8x16xf32> to vector<64x16xf32>
    %c0_2 = arith.constant 0 : index
    %c0_3 = arith.constant 0 : index
    %2 = vector.load %arg4[%c0_2, %c0_3] : memref<16x32xf32, #tpu.memory_space<vmem>>, vector<16x32xf32>
    %cst = arith.constant dense<0.000000e+00> : vector<64x32xf32>
    %3 = tpu.matmul %1, %2, %cst {dimension_numbers = #tpu.dot_dimension_numbers<[1], [0], [0], [1], [0, 0, 1, 1], [], []>} : vector<64x16xf32>, vector<16x32xf32>, vector<64x32xf32> -> vector<64x32xf32>
    %4 = vector.shape_cast %3 : vector<64x32xf32> to vector<8x8x32xf32>
    %c0_4 = arith.constant 0 : index
    %c0_5 = arith.constant 0 : index
    %5 = vector.load %arg3[%c0_4, %c0_5] : memref<8x16xf32, #tpu.memory_space<vmem>>, vector<8x16xf32>
    %c0_6 = arith.constant 0 : index
    %c0_7 = arith.constant 0 : index
    %6 = vector.load %arg5[%c0_6, %c0_7] : memref<16x32xf32, #tpu.memory_space<vmem>>, vector<16x32xf32>
    %cst_8 = arith.constant dense<0.000000e+00> : vector<8x32xf32>
    %7 = tpu.matmul %5, %6, %cst_8 {dimension_numbers = #tpu.dot_dimension_numbers<[1], [0], [0], [1], [0, 0, 1, 1], [], []>} : vector<8x16xf32>, vector<16x32xf32>, vector<8x32xf32> -> vector<8x32xf32>
    %8 = vector.shape_cast %7 : vector<8x32xf32> to vector<8x1x32xf32>
    %9 = vector.broadcast %8 : vector<8x1x32xf32> to vector<8x8x32xf32>
    %10 = arith.addf %4, %9 : vector<8x8x32xf32>
    %c0_9 = arith.constant 0 : index
    %c0_10 = arith.constant 0 : index
    %11 = vector.load %arg6[%c0_9, %c0_10] : memref<1x32xf32, #tpu.memory_space<vmem>>, vector<1x32xf32>
    %12 = vector.shape_cast %11 : vector<1x32xf32> to vector<1x1x32xf32>
    %13 = vector.broadcast %12 : vector<1x1x32xf32> to vector<8x8x32xf32>
    %14 = arith.addf %10, %13 : vector<8x8x32xf32>
    %cst_11 = arith.constant 0.000000e+00 : f32
    %15 = vector.broadcast %cst_11 : f32 to vector<8x8x32xf32>
    %16 = arith.maximumf %14, %15 : vector<8x8x32xf32>
    %c0_12 = arith.constant 0 : index
    %c0_13 = arith.constant 0 : index
    %17 = vector.load %arg7[%c0_12, %c0_13] : memref<1x32xf32, #tpu.memory_space<vmem>>, vector<1x32xf32>
    %18 = vector.shape_cast %17 : vector<1x32xf32> to vector<1x1x32xf32>
    %19 = vector.broadcast %18 : vector<1x1x32xf32> to vector<8x8x32xf32>
    %20 = arith.mulf %16, %19 : vector<8x8x32xf32>
    %cst_14 = arith.constant dense<0.000000e+00> : vector<8x8xf32>
    %21 = vector.multi_reduction <add>, %20, %cst_14 [2] : vector<8x8x32xf32> to vector<8x8xf32>
    %c0_15 = arith.constant 0 : index
    %c0_16 = arith.constant 0 : index
    %22 = memref.load %arg8[%c0_15, %c0_16] : memref<1x1xf32, #tpu.memory_space<smem>>
    %23 = vector.broadcast %22 : f32 to vector<8x8xf32>
    %24 = arith.addf %21, %23 : vector<8x8xf32>
    %c0_17 = arith.constant 0 : index
    %c0_18 = arith.constant 0 : index
    %25 = vector.load %arg9[%c0_17, %c0_18] : memref<8x8xf32, #tpu.memory_space<vmem>>, vector<8x8xf32>
    tpu.vector_store %arg9[%c0_17, %c0_18], %24 {strides = array<i32>} : memref<8x8xf32, #tpu.memory_space<vmem>>, vector<8x8xf32>,
    return
  }
  func.func @transform_0(%arg0: i32, %arg1: i32) -> (i32, i32, i32) {
    %c0_i32 = arith.constant 0 : i32
    %c0_i32_0 = arith.constant 0 : i32
    return %arg0, %arg1, %c0_i32 : i32, i32, i32
  }
  func.func @transform_1(%arg0: i32, %arg1: i32) -> (i32, i32) {
    %c0_i32 = arith.constant 0 : i32
    %c0_i32_0 = arith.constant 0 : i32
    return %arg0, %c0_i32 : i32, i32
  }
  func.func @transform_2(%arg0: i32, %arg1: i32) -> (i32, i32) {
    %c0_i32 = arith.constant 0 : i32
    %c0_i32_0 = arith.constant 0 : i32
    %c0_i32_1 = arith.constant 0 : i32
    return %c0_i32, %c0_i32_0 : i32, i32
  }
  func.func @transform_3(%arg0: i32, %arg1: i32) -> (i32, i32) {
    %c0_i32 = arith.constant 0 : i32
    %c0_i32_0 = arith.constant 0 : i32
    %c0_i32_1 = arith.constant 0 : i32
    return %c0_i32, %c0_i32_0 : i32, i32
  }
  func.func @transform_4(%arg0: i32, %arg1: i32) -> (i32, i32) {
    %c0_i32 = arith.constant 0 : i32
    %c0_i32_0 = arith.constant 0 : i32
    %c0_i32_1 = arith.constant 0 : i32
    return %c0_i32, %c0_i32_0 : i32, i32
  }
  func.func @transform_5(%arg0: i32, %arg1: i32) -> (i32, i32) {
    %c0_i32 = arith.constant 0 : i32
    %c0_i32_0 = arith.constant 0 : i32
    %c0_i32_1 = arith.constant 0 : i32
    return %c0_i32, %c0_i32_0 : i32, i32
  }
  func.func @transform_6(%arg0: i32, %arg1: i32) -> (i32, i32) {
    %c0_i32 = arith.constant 0 : i32
    %c0_i32_0 = arith.constant 0 : i32
    %c0_i32_1 = arith.constant 0 : i32
    return %c0_i32, %c0_i32_0 : i32, i32
  }
  func.func @transform_7(%arg0: i32, %arg1: i32) -> (i32, i32) {
    %c0_i32 = arith.constant 0 : i32
    return %arg0, %arg1 : i32, i32
  }
}

</mosaic_0001>

<llo_original>
// kernel: tpu_custom_call.1
$region0: #{tpu_custom_call.1}
  #allocation0 [shape = 'u32[]', space=smem, size = 0x4, offset = 0x4, fixed_abs, tag = 'smem constant byte address 0x4 - core index']
  #allocation1 [shape = 'u32[72,128]{1,0:T(1,128)}', space=vmem, size = 0x9000, scoped, tag = 'internal scratch']
  #allocation2 [shape = 'f32[1,1]{1,0:T(1,128)S(6)}', space=smem, size = 0x200, scoped, tag = 'scoped memory for tpu_custom_call.1']
  %s0 = inlined_call_operand.hbm [shape: f32[8,8,16], index: 0, kind: input, shape index: {}]
  %s1 = inlined_call_operand.hbm [shape: f32[8,16], index: 1, kind: input, shape index: {}]
  %s2 = inlined_call_operand.hbm [shape: f32[16,32], index: 2, kind: input, shape index: {}]
  %s3 = inlined_call_operand.hbm [shape: f32[16,32], index: 3, kind: input, shape index: {}]
  %s4 = inlined_call_operand.vmem [shape: f32[1,32], index: 4, kind: input, shape index: {}]
  %s5 = inlined_call_operand.vmem [shape: f32[1,32], index: 5, kind: input, shape index: {}]
  %s6 = inlined_call_operand.<no memory space> [shape: f32[1,1], index: 6, kind: input, shape index: {}]
  %s7 = inlined_call_operand.hbm [shape: f32[8,8], index: 7, kind: output, shape index: {}]
  %s8 = sld [smem:[#allocation0]]
  $region54: #{tpu_custom_call.1} parent=0
    _
  %s10 = ssub.s32 1, %s8
  %s11 = scalar_select 0, %s10, %s8
  %12 = sst [smem:[#allocation2]] %s6
  $region1: #{tpu_custom_call.1} parent=0
    #allocation3 [shape = 'u8[32768]{0}', space=vmem, size = 0x8000, scoped, tag = 'input window, operand 0, single buffered']
    #allocation4 [shape = 's32[1]{0}', space=sflag, size = 0x4, scoped, tag = 'scoped memory for tpu_custom_call.1']
    #allocation5 [shape = 's32[1]{0}', space=sflag, size = 0x4, scoped, tag = 'scoped memory for tpu_custom_call.1']
    #allocation6 [shape = 'u8[4096]{0}', space=vmem, size = 0x1000, scoped, tag = 'input window, operand 1, single buffered']
    #allocation7 [shape = 's32[1]{0}', space=sflag, size = 0x4, scoped, tag = 'scoped memory for tpu_custom_call.1']
    #allocation8 [shape = 'u8[8192]{0}', space=vmem, size = 0x2000, scoped, tag = 'input window, operand 2, single buffered']
    #allocation9 [shape = 'u8[8192]{0}', space=vmem, size = 0x2000, scoped, tag = 'input window, operand 3, single buffered']
    #allocation10 [shape = 's32[1]{0}', space=sflag, size = 0x4, scoped, tag = 'scoped memory for tpu_custom_call.1']
    #allocation11 [shape = 'u8[4096]{0}', space=vmem, size = 0x1000, scoped, tag = 'output window, operand 0, single buffered']
    %13 = vsyncpa [#allocation4], 0
    %14 = vsyncpa [#allocation7], 0
    %15 = vsyncpa [#allocation10], 0
    %16 = vsyncpa [#allocation5], 0
    // Predicated region
    $region2: #{tpu_custom_call.1} parent=1 // pred_check
      _
    $region3: #{tpu_custom_call.1} parent=1 // pred_check_branch
      %18 = sbr.rel (0) target = $region5
    $region4: #{tpu_custom_call.1} parent=1 // pred_region
      %20 = vsyncadd [#allocation4], 0
      %s21 = sshll.u32 %s0, 4
      %s22 = int_to_ptr.hbm [resolvable:$true] %s21
      %s23 = sshll.u32 [#allocation3], 4
      %s24 = int_to_ptr.vmem [resolvable:$true] %s23
      %29 = dma.hbm_to_vmem [thread:$0]  %s22, 1024, %s24, [#allocation4], 128, 128, 8
    $region5: #{tpu_custom_call.1} parent=1 // pred_fallthru
      _
    // Predicated region
    $region6: #{tpu_custom_call.1} parent=1 // pred_check
      _
    $region7: #{tpu_custom_call.1} parent=1 // pred_check_branch
      %31 = sbr.rel (0) target = $region9
    $region8: #{tpu_custom_call.1} parent=1 // pred_region
      %33 = vsyncadd [#allocation7], 0
      %s35 = sshll.u32 %s1, 4
      %s36 = int_to_ptr.hbm [resolvable:$true] %s35
      %s37 = sshll.u32 [#allocation6], 4
      %s38 = int_to_ptr.vmem [resolvable:$true] %s37
      %40 = dma.hbm_to_vmem [thread:$0]  %s36, 128, %s38, [#allocation7]
    $region9: #{tpu_custom_call.1} parent=1 // pred_fallthru
      _
    // Predicated region
    $region10: #{tpu_custom_call.1} parent=1 // pred_check
      _
    $region11: #{tpu_custom_call.1} parent=1 // pred_check_branch
      %42 = sbr.rel (0) target = $region13
    $region12: #{tpu_custom_call.1} parent=1 // pred_region
      %44 = vsyncadd [#allocation7], 0
      %s45 = sshll.u32 %s2, 4
      %s46 = int_to_ptr.hbm [resolvable:$true] %s45
      %s47 = sshll.u32 [#allocation8], 4
      %s48 = int_to_ptr.vmem [resolvable:$true] %s47
      %53 = dma.hbm_to_vmem [thread:$0]  %s46, 256, %s48, [#allocation7], 128, 128, 8
    $region13: #{tpu_custom_call.1} parent=1 // pred_fallthru
      _
    // Predicated region
    $region14: #{tpu_custom_call.1} parent=1 // pred_check
      _
    $region15: #{tpu_custom_call.1} parent=1 // pred_check_branch
      %55 = sbr.rel (0) target = $region17
    $region16: #{tpu_custom_call.1} parent=1 // pred_region
      %57 = vsyncadd [#allocation10], 0
      %s58 = sshll.u32 %s3, 4
      %s59 = int_to_ptr.hbm [resolvable:$true] %s58
      %s60 = sshll.u32 [#allocation9], 4
      %s61 = int_to_ptr.vmem [resolvable:$true] %s60
      %66 = dma.hbm_to_vmem [thread:$0]  %s59, 256, %s61, [#allocation10], 128, 128, 8
    $region17: #{tpu_custom_call.1} parent=1 // pred_fallthru
      _
    // Predicated region
    $region18: #{tpu_custom_call.1} parent=1 // pred_check
      _
    $region19: #{tpu_custom_call.1} parent=1 // pred_check_branch
      %68 = sbr.rel (0) target = $region21
    $region20: #{tpu_custom_call.1} parent=1 // pred_region
      _
    $region21: #{tpu_custom_call.1} parent=1 // pred_fallthru
      _
    // Predicated region
    $region22: #{tpu_custom_call.1} parent=1 // pred_check
      _
    $region23: #{tpu_custom_call.1} parent=1 // pred_check_branch
      %70 = sbr.rel (0) target = $region25
    $region24: #{tpu_custom_call.1} parent=1 // pred_region
      _
    $region25: #{tpu_custom_call.1} parent=1 // pred_fallthru
      _
    // Predicated region
    $region26: #{tpu_custom_call.1} parent=1 // pred_check
      _
    $region27: #{tpu_custom_call.1} parent=1 // pred_check_branch
      %72 = sbr.rel (0) target = $region29
    $region28: #{tpu_custom_call.1} parent=1 // pred_region
      _
    $region29: #{tpu_custom_call.1} parent=1 // pred_fallthru
      _
    // Predicated region
    $region30: #{tpu_custom_call.1} parent=1 // pred_check
      _
    $region31: #{tpu_custom_call.1} parent=1 // pred_check_branch
      %74 = sbr.rel (0) target = $region33
    $region32: #{tpu_custom_call.1} parent=1 // pred_region
      %76 = dma.done [#allocation4], 1024
    $region33: #{tpu_custom_call.1} parent=1 // pred_fallthru
      _
    // Predicated region
    $region34: #{tpu_custom_call.1} parent=1 // pred_check
      _
    $region35: #{tpu_custom_call.1} parent=1 // pred_check_branch
      %78 = sbr.rel (0) target = $region37
    $region36: #{tpu_custom_call.1} parent=1 // pred_region
      %80 = dma.done [#allocation7], 128
    $region37: #{tpu_custom_call.1} parent=1 // pred_fallthru
      _
    // Predicated region
    $region38: #{tpu_custom_call.1} parent=1 // pred_check
      _
    $region39: #{tpu_custom_call.1} parent=1 // pred_check_branch
      %82 = sbr.rel (0) target = $region41
    $region40: #{tpu_custom_call.1} parent=1 // pred_region
      %84 = dma.done [#allocation7], 256
    $region41: #{tpu_custom_call.1} parent=1 // pred_fallthru
      _
    // Predicated region
    $region42: #{tpu_custom_call.1} parent=1 // pred_check
      _
    $region43: #{tpu_custom_call.1} parent=1 // pred_check_branch
      %86 = sbr.rel (0) target = $region45
    $region44: #{tpu_custom_call.1} parent=1 // pred_region
      %88 = dma.done [#allocation10], 256
    $region45: #{tpu_custom_call.1} parent=1 // pred_fallthru
      _
    %v89 = vld [vmem:[#allocation3] sm:$0xff]
    %v90 = vld [vmem:[#allocation3 + $0x8] sm:$0xff]
    %v91 = vld [vmem:[#allocation3 + $0x10] sm:$0xff]
    %v92 = vld [vmem:[#allocation3 + $0x18] sm:$0xff]
    %v93 = vld [vmem:[#allocation3 + $0x20] sm:$0xff]
    %v94 = vld [vmem:[#allocation3 + $0x28] sm:$0xff]
    %v95 = vld [vmem:[#allocation3 + $0x30] sm:$0xff]
    %v96 = vld [vmem:[#allocation3 + $0x38] sm:$0xff]
    %v97 = vld [vmem:[#allocation8] sm:$0xff]
    %v98 = vld [vmem:[#allocation8 + $0x8] sm:$0xff]
    %vm99 = vcmask 130048
    %v101 = vsel %vm99, %v89, 0
    %v104 = vsel %vm99, %v90, 0
    %v107 = vsel %vm99, %v91, 0
    %v110 = vsel %vm99, %v92, 0
    %v113 = vsel %vm99, %v93, 0
    %v116 = vsel %vm99, %v94, 0
    %v119 = vsel %vm99, %v95, 0
    %v122 = vsel %vm99, %v96, 0
    %124 = vmatpush.msra.mxu0 0.0
    %125 = vmatpush.msra.mxu0 0.0
    %126 = vmatpush.msra.mxu0 0.0
    %127 = vmatpush.msra.mxu0 0.0
    %128 = vmatpush.msra.mxu0 0.0
    %129 = vmatpush.msra.mxu0 0.0
    %130 = vmatpush.msra.mxu0 0.0
    %131 = vmatpush.msra.mxu0 0.0
    %132 = vmatpush.msra.mxu0 0.0
    %133 = vmatpush.msra.mxu0 0.0
    %134 = vmatpush.msra.mxu0 0.0
    %135 = vmatpush.msra.mxu0 0.0
    %136 = vmatpush.msra.mxu0 0.0
    %137 = vmatpush.msra.mxu0 0.0
    %138 = vmatpush.msra.mxu0 %v98
    %139 = vmatpush.msra.mxu0 %v97
    %140 = vmatmul.f32.gmra.mxu0 %v101
    %v141 = vpop.f32.mrf.mxu0
    %v142 = vadd.f32 0.0, %v141
    %143 = vmatmul.f32.gmra.mxu0 %v104
    %v144 = vpop.f32.mrf.mxu0
    %v145 = vadd.f32 0.0, %v144
    %146 = vmatmul.f32.gmra.mxu0 %v107
    %v147 = vpop.f32.mrf.mxu0
    %v148 = vadd.f32 0.0, %v147
    %149 = vmatmul.f32.gmra.mxu0 %v110
    %v150 = vpop.f32.mrf.mxu0
    %v151 = vadd.f32 0.0, %v150
    %152 = vmatmul.f32.gmra.mxu0 %v113
    %v153 = vpop.f32.mrf.mxu0
    %v154 = vadd.f32 0.0, %v153
    %155 = vmatmul.f32.gmra.mxu0 %v116
    %v156 = vpop.f32.mrf.mxu0
    %v157 = vadd.f32 0.0, %v156
    %158 = vmatmul.f32.gmra.mxu0 %v119
    %v159 = vpop.f32.mrf.mxu0
    %v160 = vadd.f32 0.0, %v159
    %161 = vmatmul.f32.gmra.mxu0 %v122
    %v162 = vpop.f32.mrf.mxu0
    %v163 = vadd.f32 0.0, %v162
    %164 = vdwg.mxu0
    %v165 = vld [vmem:[#allocation6] sm:$0xff]
    %v166 = vld [vmem:[#allocation9] sm:$0xff]
    %v167 = vld [vmem:[#allocation9 + $0x8] sm:$0xff]
    %v169 = vsel %vm99, %v165, 0
    %171 = vmatpush.msra.mxu0 0.0
    %172 = vmatpush.msra.mxu0 0.0
    %173 = vmatpush.msra.mxu0 0.0
    %174 = vmatpush.msra.mxu0 0.0
    %175 = vmatpush.msra.mxu0 0.0
    %176 = vmatpush.msra.mxu0 0.0
    %177 = vmatpush.msra.mxu0 0.0
    %178 = vmatpush.msra.mxu0 0.0
    %179 = vmatpush.msra.mxu0 0.0
    %180 = vmatpush.msra.mxu0 0.0
    %181 = vmatpush.msra.mxu0 0.0
    %182 = vmatpush.msra.mxu0 0.0
    %183 = vmatpush.msra.mxu0 0.0
    %184 = vmatpush.msra.mxu0 0.0
    %185 = vmatpush.msra.mxu0 %v167
    %186 = vmatpush.msra.mxu0 %v166
    %187 = vmatmul.f32.gmra.mxu0 %v169
    %v188 = vpop.f32.mrf.mxu0
    %v189 = vadd.f32 0.0, %v188
    %190 = vdwg.mxu0
    %v192 = vrot.slane %v189, 1
    %v193 = vrot.slane %v189, 2
    %v194 = vrot.slane %v189, 3
    %v195 = vrot.slane %v189, 4
    %v196 = vrot.slane %v189, 5
    %v197 = vrot.slane %v189, 6
    %v198 = vrot.slane %v189, 7
    %v199 = vperm.slane %v189, 0
    %v200 = vperm.slane %v192, 0
    %v201 = vperm.slane %v193, 0
    %v202 = vperm.slane %v194, 0
    %v203 = vperm.slane %v195, 0
    %v204 = vperm.slane %v196, 0
    %v205 = vperm.slane %v197, 0
    %v206 = vperm.slane %v198, 0
    %v215 = vadd.f32 %v142, %v199
    %v216 = vadd.f32 %v145, %v200
    %v217 = vadd.f32 %v148, %v201
    %v218 = vadd.f32 %v151, %v202
    %v219 = vadd.f32 %v154, %v203
    %v220 = vadd.f32 %v157, %v204
    %v221 = vadd.f32 %v160, %v205
    %v222 = vadd.f32 %v163, %v206
    %v223 = vld [vmem:[%s4] sm:$0x1]
    %v225 = vperm.slane %v223, 0
    %v227 = vadd.f32 %v215, %v225
    %v228 = vadd.f32 %v216, %v225
    %v229 = vadd.f32 %v217, %v225
    %v230 = vadd.f32 %v218, %v225
    %v231 = vadd.f32 %v219, %v225
    %v232 = vadd.f32 %v220, %v225
    %v233 = vadd.f32 %v221, %v225
    %v234 = vadd.f32 %v222, %v225
    %v235 = vmax.f32 %v227, 0.0
    %v236 = vmax.f32 %v228, 0.0
    %v237 = vmax.f32 %v229, 0.0
    %v238 = vmax.f32 %v230, 0.0
    %v239 = vmax.f32 %v231, 0.0
    %v240 = vmax.f32 %v232, 0.0
    %v241 = vmax.f32 %v233, 0.0
    %v242 = vmax.f32 %v234, 0.0
    %v243 = vld [vmem:[%s5] sm:$0x1]
    %v245 = vperm.slane %v243, 0
    %v247 = vmul.f32 %v235, %v245
    %v248 = vmul.f32 %v236, %v245
    %v249 = vmul.f32 %v237, %v245
    %v250 = vmul.f32 %v238, %v245
    %v251 = vmul.f32 %v239, %v245
    %v252 = vmul.f32 %v240, %v245
    %v253 = vmul.f32 %v241, %v245
    %v254 = vmul.f32 %v242, %v245
    %vm255 = vcmask 261120
    %v256 = vsel %vm255, %v247, 0.0
    %257 = vadd.xlane.f32.xlu0 %v256
    %v258 = vpop.xlane.xlu0 %257
    %v259 = vsel %vm255, %v248, 0.0
    %260 = vadd.xlane.f32.xlu0 %v259
    %v261 = vpop.xlane.xlu0 %260
    %v262 = vsel %vm255, %v249, 0.0
    %263 = vadd.xlane.f32.xlu0 %v262
    %v264 = vpop.xlane.xlu0 %263
    %v265 = vsel %vm255, %v250, 0.0
    %266 = vadd.xlane.f32.xlu0 %v265
    %v267 = vpop.xlane.xlu0 %266
    %v268 = vsel %vm255, %v251, 0.0
    %269 = vadd.xlane.f32.xlu0 %v268
    %v270 = vpop.xlane.xlu0 %269
    %v271 = vsel %vm255, %v252, 0.0
    %272 = vadd.xlane.f32.xlu0 %v271
    %v273 = vpop.xlane.xlu0 %272
    %v274 = vsel %vm255, %v253, 0.0
    %275 = vadd.xlane.f32.xlu0 %v274
    %v276 = vpop.xlane.xlu0 %275
    %v277 = vsel %vm255, %v254, 0.0
    %278 = vadd.xlane.f32.xlu0 %v277
    %v279 = vpop.xlane.xlu0 %278
    %s280 = sld [smem:[#allocation2]]
    %v281 = vstv %s280
    %v282 = vadd.f32 %v258, %v281
    %v283 = vadd.f32 %v261, %v281
    %v284 = vadd.f32 %v264, %v281
    %v285 = vadd.f32 %v267, %v281
    %v286 = vadd.f32 %v270, %v281
    %v287 = vadd.f32 %v273, %v281
    %v288 = vadd.f32 %v276, %v281
    %v289 = vadd.f32 %v279, %v281
    %v298 = vlaneseq
    %v299 = vand.u32 %v298, 127
    %v300 = vperm.slane %v282, %v299
    %v301 = vperm.slane %v283, %v299
    %v302 = vperm.slane %v284, %v299
    %v303 = vperm.slane %v285, %v299
    %v304 = vperm.slane %v286, %v299
    %v305 = vperm.slane %v287, %v299
    %v306 = vperm.slane %v288, %v299
    %v307 = vperm.slane %v289, %v299
    %vm308 = vcmask 1041409
    %v309 = vsel %vm308, %v301, %v300
    %vm310 = vcmask 1042434
    %v311 = vsel %vm310, %v302, %v309
    %vm312 = vcmask 1043459
    %v313 = vsel %vm312, %v303, %v311
    %vm314 = vcmask 1044484
    %v315 = vsel %vm314, %v304, %v313
    %vm316 = vcmask 1045509
    %v317 = vsel %vm316, %v305, %v315
    %vm318 = vcmask 1046534
    %v319 = vsel %vm318, %v306, %v317
    %vm320 = vcmask 1047559
    %v321 = vsel %vm320, %v307, %v319
    %vm323 = vcmask 64512
    %324 = vst.msk [vmem:[#allocation11] sm:$0xff] %vm323, %v321
    // Predicated region
    $region46: #{tpu_custom_call.1} parent=1 // pred_check
      _
    $region47: #{tpu_custom_call.1} parent=1 // pred_check_branch
      %326 = sbr.rel (0) target = $region49
    $region48: #{tpu_custom_call.1} parent=1 // pred_region
      %328 = vsyncadd [#allocation5], 0
      %s330 = sshll.u32 [#allocation11], 4
      %s331 = int_to_ptr.vmem [resolvable:$true] %s330
      %s332 = sshll.u32 %s7, 4
      %s333 = int_to_ptr.hbm [resolvable:$true] %s332
      %335 = dma.vmem_to_hbm [thread:$0]  %s331, 128, %s333, [#allocation5]
    $region49: #{tpu_custom_call.1} parent=1 // pred_fallthru
      _
    // Predicated region
    $region50: #{tpu_custom_call.1} parent=1 // pred_check
      _
    $region51: #{tpu_custom_call.1} parent=1 // pred_check_branch
      %337 = sbr.rel (0) target = $region53
    $region52: #{tpu_custom_call.1} parent=1 // pred_region
      %339 = dma.done [#allocation5], 128
    $region53: #{tpu_custom_call.1} parent=1 // pred_fallthru
      _
    %340 = vsyncpa [#allocation4], 1
    %341 = vsyncpa [#allocation7], 1
    %342 = vsyncpa [#allocation10], 1
    %343 = vsyncpa [#allocation5], 1

</llo_original>
